<compile_context>
chip_gen: v7x
topology: tpu7x:2x2x1
jax: 0.10.0
libtpu: 0.0.40
codegen_flags: <defaults>
</compile_context>

<pallas_src>
import functools

import jax
import jax.numpy as jnp
from jax import lax
from jax.experimental import pallas as pl
from jax.experimental.pallas import tpu as pltpu


def _round_up(n, m):
    return ((n + m - 1) // m) * m


def dqn_kernel(x_ref, w1_ref, b1_ref, w2_ref, b2_ref, w3_ref, b3_ref, o_ref,
               *, chunk):
    # Tiny weights/biases are resident in VMEM (constant index_map); load once.
    w1 = w1_ref[...]            # bf16 [F, 128]
    b1 = b1_ref[...]            # f32  [1, 128]
    w2 = w2_ref[...]            # bf16 [128, 128]
    b2 = b2_ref[...]            # f32  [1, 128]
    w3 = w3_ref[...]            # bf16 [128, A]
    b3 = b3_ref[...]            # f32  [1, A]

    n_chunks = x_ref.shape[0] // chunk

    def body(c, carry):
        r = pl.multiple_of(c * chunk, chunk)
        # bf16 cast happens here, on the VMEM tile (no extra HBM pass).
        x = x_ref[pl.ds(r, chunk), :].astype(jnp.bfloat16)
        # dense1 + relu (f32 accumulate, bf16 for the next matmul)
        h1 = jnp.dot(x, w1, preferred_element_type=jnp.float32) + b1
        h1 = jnp.maximum(h1, 0.0).astype(jnp.bfloat16)
        # dense3 + relu
        h2 = jnp.dot(h1, w2, preferred_element_type=jnp.float32) + b2
        h2 = jnp.maximum(h2, 0.0).astype(jnp.bfloat16)
        # dense4 (no activation)
        o_ref[pl.ds(r, chunk), :] = (
            jnp.dot(h2, w3, preferred_element_type=jnp.float32) + b3
        ).astype(o_ref.dtype)
        return carry

    lax.fori_loop(0, n_chunks, body, 0, unroll=True)


def pack_params(params):
    """Zero-pad hidden widths to 128 lanes; cast matmul weights to bf16.

    Padding is exact: padded b1/b2 entries are 0, so ReLU of the padded
    hidden columns is 0, and the padded rows of the next weight multiply
    those zeros.
    """
    w1, b1 = params["w1"], params["b1"]
    w2, b2 = params["w2"], params["b2"]
    w3, b3 = params["w3"], params["b3"]
    F, H1 = w1.shape
    H2 = w2.shape[1]
    A = w3.shape[1]
    H1p, H2p = _round_up(H1, 128), _round_up(H2, 128)

    def pad2(a, rows, cols):
        return jnp.pad(a, ((0, rows - a.shape[0]), (0, cols - a.shape[1])))

    return dict(
        w1=pad2(w1, F, H1p).astype(jnp.bfloat16),
        b1=pad2(b1, 1, H1p),                       # f32
        w2=pad2(w2, H1p, H2p).astype(jnp.bfloat16),
        b2=pad2(b2, 1, H2p),                       # f32
        w3=pad2(w3, H2p, A).astype(jnp.bfloat16),
        b3=b3,                                     # f32 [1, A]
    )


def dqn_forward(x, packed, *, tb=8192, chunk=512):
    """x: [B, F] float32 (native); packed: output of pack_params. -> [B, A] f32."""
    B, F = x.shape
    A = packed["w3"].shape[1]

    # Batch tile: multiple of 8 sublanes, >=2 grid steps when the batch allows
    # it (v7x megacore), capped at `tb`.  No explicit padding of x: the last
    # (partial) block is masked by Pallas and rows are independent.
    B8 = _round_up(B, 8)
    TB = max(8, min(tb, _round_up(pl.cdiv(B8, 2), 8)))
    if TB > chunk:
        TB = _round_up(TB, chunk)   # keep TB a multiple of the sub-chunk
        ch = chunk
    else:
        ch = TB
    grid = (pl.cdiv(B, TB),)

    resident = lambda a: pl.BlockSpec(a.shape, lambda i: (0, 0))

    out = pl.pallas_call(
        functools.partial(dqn_kernel, chunk=ch),
        out_shape=jax.ShapeDtypeStruct((B, A), jnp.float32),
        grid=grid,
        in_specs=[
            pl.BlockSpec((TB, F), lambda i: (i, 0)),            # x: pipelined
            resident(packed["w1"]), resident(packed["b1"]),
            resident(packed["w2"]), resident(packed["b2"]),
            resident(packed["w3"]), resident(packed["b3"]),
        ],
        out_specs=pl.BlockSpec((TB, A), lambda i: (i, 0)),
        compiler_params=pltpu.CompilerParams(
            dimension_semantics=("parallel",),      # megacore split on v7x
        ),
    )(x, packed["w1"], packed["b1"], packed["w2"], packed["b2"],
      packed["w3"], packed["b3"])

    return out


def init_params(key, in_features, action_space):
    """Deterministic init mimicking nn.Linear's uniform(-1/sqrt(fan_in), ...)."""
    dims = [(in_features, 64), (64, 32), (32, action_space)]
    params = {}
    for i, (fan_in, fan_out) in enumerate(dims, start=1):
        key, kw, kb = jax.random.split(key, 3)
        bound = 1.0 / jnp.sqrt(float(fan_in))
        params[f"w{i}"] = jax.random.uniform(
            kw, (fan_in, fan_out), jnp.float32, minval=-bound, maxval=bound
        )
        params[f"b{i}"] = jax.random.uniform(
            kb, (1, fan_out), jnp.float32, minval=-bound, maxval=bound
        )
    return params


def reference_forward(x, params):
    h1 = jnp.maximum(x @ params["w1"] + params["b1"], 0.0)
    h2 = jnp.maximum(h1 @ params["w2"] + params["b2"], 0.0)
    return h2 @ params["w3"] + params["b3"]


if __name__ == "__main__":
    # env.observation_space.shape = (8,), env.action_space.n = 4
    BATCH, IN_FEATURES, ACTIONS = 2, 8, 4

    key = jax.random.PRNGKey(0)
    key, kx = jax.random.split(key)
    x = jax.random.normal(kx, (BATCH, IN_FEATURES), jnp.float32)

    params = init_params(key, IN_FEATURES, ACTIONS)
    packed = pack_params(params)

    out = dqn_forward(x, packed)
    out = jax.block_until_ready(out)

    ref = reference_forward(x, params)            # full-f32 reference
    assert out.shape == (BATCH, ACTIONS)
    # bf16 matmul inputs with f32 accumulation -> relaxed tolerance vs f32 ref
    assert jnp.allclose(out, ref, atol=5e-2, rtol=5e-2), "mismatch vs reference"
    # greedy-action stability check (argmax vs f32 reference)
    assert jnp.array_equal(jnp.argmax(out, -1), jnp.argmax(ref, -1)), "argmax mismatch"

    # TODO(synk): Adam optimizer / replay buffer / TD-loss epilogue are training
    # infrastructure, not part of the forward pass; for the small-batch DQN
    # regime the real win is fusing online+target forwards + loss into one call.

    print("KERNEL_OK")
</pallas_src>

<mosaic_0001>
module attributes {stable_mosaic.version = 11 : i64} {
  func.func @dqn_kernel(%arg0: i32, %arg1: memref<8x8xf32, #tpu.memory_space<vmem>>, %arg2: memref<8x128xbf16, #tpu.memory_space<vmem>>, %arg3: memref<1x128xf32, #tpu.memory_space<vmem>>, %arg4: memref<128x128xbf16, #tpu.memory_space<vmem>>, %arg5: memref<1x128xf32, #tpu.memory_space<vmem>>, %arg6: memref<128x4xbf16, #tpu.memory_space<vmem>>, %arg7: memref<1x4xf32, #tpu.memory_space<vmem>>, %arg8: memref<8x4xf32, #tpu.memory_space<vmem>>) attributes {dimension_semantics = [#tpu.dimension_semantics<parallel>], iteration_bounds = array<i64: 1>, scalar_prefetch = 0 : i64, scratch_operands = 0 : i64, tpu.core_type = #tpu.core_type<tc>, window_params = [{transform_indices = @transform_0, window_bounds = array<i64: 8, 8>}, {pipeline_mode = #tpu.pipeline_mode<synchronous>, transform_indices = @transform_1, window_bounds = array<i64: 8, 128>}, {pipeline_mode = #tpu.pipeline_mode<synchronous>, transform_indices = @transform_2, window_bounds = array<i64: 1, 128>}, {pipeline_mode = #tpu.pipeline_mode<synchronous>, transform_indices = @transform_3, window_bounds = array<i64: 128, 128>}, {pipeline_mode = #tpu.pipeline_mode<synchronous>, transform_indices = @transform_4, window_bounds = array<i64: 1, 128>}, {pipeline_mode = #tpu.pipeline_mode<synchronous>, transform_indices = @transform_5, window_bounds = array<i64: 128, 4>}, {pipeline_mode = #tpu.pipeline_mode<synchronous>, transform_indices = @transform_6, window_bounds = array<i64: 1, 4>}, {transform_indices = @transform_7, window_bounds = array<i64: 8, 4>}]} {
    %c0 = arith.constant 0 : index
    %c0_0 = arith.constant 0 : index
    %0 = vector.load %arg2[%c0, %c0_0] : memref<8x128xbf16, #tpu.memory_space<vmem>>, vector<8x128xbf16>
    %c0_1 = arith.constant 0 : index
    %c0_2 = arith.constant 0 : index
    %1 = vector.load %arg3[%c0_1, %c0_2] : memref<1x128xf32, #tpu.memory_space<vmem>>, vector<1x128xf32>
    %c0_3 = arith.constant 0 : index
    %c0_4 = arith.constant 0 : index
    %2 = vector.load %arg4[%c0_3, %c0_4] : memref<128x128xbf16, #tpu.memory_space<vmem>>, vector<128x128xbf16>
    %c0_5 = arith.constant 0 : index
    %c0_6 = arith.constant 0 : index
    %3 = vector.load %arg5[%c0_5, %c0_6] : memref<1x128xf32, #tpu.memory_space<vmem>>, vector<1x128xf32>
    %c0_7 = arith.constant 0 : index
    %c0_8 = arith.constant 0 : index
    %4 = vector.load %arg6[%c0_7, %c0_8] : memref<128x4xbf16, #tpu.memory_space<vmem>>, vector<128x4xbf16>
    %c0_9 = arith.constant 0 : index
    %c0_10 = arith.constant 0 : index
    %5 = vector.load %arg7[%c0_9, %c0_10] : memref<1x4xf32, #tpu.memory_space<vmem>>, vector<1x4xf32>
    %c0_i32 = arith.constant 0 : i32
    %c8_i32 = arith.constant 8 : i32
    %6 = arith.muli %c0_i32, %c8_i32 : i32
    %7 = tpu.assume_multiple %6, 8 : i32
    %8 = arith.index_cast %7 : i32 to index
    %c0_11 = arith.constant 0 : index
    %9 = vector.load %arg1[%8, %c0_11] : memref<8x8xf32, #tpu.memory_space<vmem>>, vector<8x8xf32>
    %10 = arith.truncf %9 : vector<8x8xf32> to vector<8x8xbf16>
    %cst = arith.constant dense<0.000000e+00> : vector<8x128xf32>
    %11 = tpu.matmul %10, %0, %cst {dimension_numbers = #tpu.dot_dimension_numbers<[1], [0], [0], [1], [0, 0, 1, 1], [], []>} : vector<8x8xbf16>, vector<8x128xbf16>, vector<8x128xf32> -> vector<8x128xf32>
    %12 = vector.broadcast %1 : vector<1x128xf32> to vector<8x128xf32>
    %13 = arith.addf %11, %12 : vector<8x128xf32>
    %cst_12 = arith.constant 0.000000e+00 : f32
    %14 = vector.broadcast %cst_12 : f32 to vector<8x128xf32>
    %15 = arith.maximumf %13, %14 : vector<8x128xf32>
    %16 = arith.truncf %15 : vector<8x128xf32> to vector<8x128xbf16>
    %cst_13 = arith.constant dense<0.000000e+00> : vector<8x128xf32>
    %17 = tpu.matmul %16, %2, %cst_13 {dimension_numbers = #tpu.dot_dimension_numbers<[1], [0], [0], [1], [0, 0, 1, 1], [], []>} : vector<8x128xbf16>, vector<128x128xbf16>, vector<8x128xf32> -> vector<8x128xf32>
    %18 = vector.broadcast %3 : vector<1x128xf32> to vector<8x128xf32>
    %19 = arith.addf %17, %18 : vector<8x128xf32>
    %cst_14 = arith.constant 0.000000e+00 : f32
    %20 = vector.broadcast %cst_14 : f32 to vector<8x128xf32>
    %21 = arith.maximumf %19, %20 : vector<8x128xf32>
    %22 = arith.truncf %21 : vector<8x128xf32> to vector<8x128xbf16>
    %cst_15 = arith.constant dense<0.000000e+00> : vector<8x4xf32>
    %23 = tpu.matmul %22, %4, %cst_15 {dimension_numbers = #tpu.dot_dimension_numbers<[1], [0], [0], [1], [0, 0, 1, 1], [], []>} : vector<8x128xbf16>, vector<128x4xbf16>, vector<8x4xf32> -> vector<8x4xf32>
    %24 = vector.broadcast %5 : vector<1x4xf32> to vector<8x4xf32>
    %25 = arith.addf %23, %24 : vector<8x4xf32>
    %26 = arith.index_cast %7 : i32 to index
    %c0_16 = arith.constant 0 : index
    %27 = vector.load %arg8[%26, %c0_16] : memref<8x4xf32, #tpu.memory_space<vmem>>, vector<8x4xf32>
    tpu.vector_store %arg8[%26, %c0_16], %25 {strides = array<i32>} : memref<8x4xf32, #tpu.memory_space<vmem>>, vector<8x4xf32>,
    %c1_i32 = arith.constant 1 : i32
    return
  }
  func.func @transform_0(%arg0: i32) -> (i32, i32) {
    %c0_i32 = arith.constant 0 : i32
    %c0_i32_0 = arith.constant 0 : i32
    return %arg0, %c0_i32 : i32, i32
  }
  func.func @transform_1(%arg0: i32) -> (i32, i32) {
    %c0_i32 = arith.constant 0 : i32
    %c0_i32_0 = arith.constant 0 : i32
    %c0_i32_1 = arith.constant 0 : i32
    return %c0_i32, %c0_i32_0 : i32, i32
  }
  func.func @transform_2(%arg0: i32) -> (i32, i32) {
    %c0_i32 = arith.constant 0 : i32
    %c0_i32_0 = arith.constant 0 : i32
    %c0_i32_1 = arith.constant 0 : i32
    return %c0_i32, %c0_i32_0 : i32, i32
  }
  func.func @transform_3(%arg0: i32) -> (i32, i32) {
    %c0_i32 = arith.constant 0 : i32
    %c0_i32_0 = arith.constant 0 : i32
    %c0_i32_1 = arith.constant 0 : i32
    return %c0_i32, %c0_i32_0 : i32, i32
  }
  func.func @transform_4(%arg0: i32) -> (i32, i32) {
    %c0_i32 = arith.constant 0 : i32
    %c0_i32_0 = arith.constant 0 : i32
    %c0_i32_1 = arith.constant 0 : i32
    return %c0_i32, %c0_i32_0 : i32, i32
  }
  func.func @transform_5(%arg0: i32) -> (i32, i32) {
    %c0_i32 = arith.constant 0 : i32
    %c0_i32_0 = arith.constant 0 : i32
    %c0_i32_1 = arith.constant 0 : i32
    return %c0_i32, %c0_i32_0 : i32, i32
  }
  func.func @transform_6(%arg0: i32) -> (i32, i32) {
    %c0_i32 = arith.constant 0 : i32
    %c0_i32_0 = arith.constant 0 : i32
    %c0_i32_1 = arith.constant 0 : i32
    return %c0_i32, %c0_i32_0 : i32, i32
  }
  func.func @transform_7(%arg0: i32) -> (i32, i32) {
    %c0_i32 = arith.constant 0 : i32
    %c0_i32_0 = arith.constant 0 : i32
    return %arg0, %c0_i32 : i32, i32
  }
}

</mosaic_0001>

<llo_original>
// kernel: tpu_custom_call.1
$region0: #{tpu_custom_call.1}
  #allocation0 [shape = 'u32[]', space=smem, size = 0x4, offset = 0x4, fixed_abs, tag = 'smem constant byte address 0x4 - core index']
  #allocation1 [shape = 'u32[144,128]{1,0:T(1,128)}', space=vmem, size = 0x12000, scoped, tag = 'internal scratch']
  %s0 = inlined_call_operand.vmem [shape: f32[2,8], index: 0, kind: input, shape index: {}]
  %s1 = inlined_call_operand.vmem [shape: bf16[8,128], index: 1, kind: input, shape index: {}]
  %s2 = inlined_call_operand.vmem [shape: f32[1,128], index: 2, kind: input, shape index: {}]
  %s3 = inlined_call_operand.vmem [shape: bf16[128,128], index: 3, kind: input, shape index: {}]
  %s4 = inlined_call_operand.vmem [shape: f32[1,128], index: 4, kind: input, shape index: {}]
  %s5 = inlined_call_operand.vmem [shape: bf16[128,4], index: 5, kind: input, shape index: {}]
  %s6 = inlined_call_operand.vmem [shape: f32[1,4], index: 6, kind: input, shape index: {}]
  %s7 = inlined_call_operand.hbm [shape: f32[2,4], index: 7, kind: output, shape index: {}]
  %s8 = sld [smem:[#allocation0]]
  $region38: #{tpu_custom_call.1} parent=0
    _
  %s10 = ssub.s32 1, %s8
  %s11 = scalar_select 0, %s10, %s8
  $region1: #{tpu_custom_call.1} parent=0
    #allocation2 [shape = 'u8[4096]{0}', space=vmem, size = 0x1000, scoped, tag = 'output window, operand 0, single buffered']
    #allocation3 [shape = 's32[1]{0}', space=sflag, size = 0x4, scoped, tag = 'scoped memory for tpu_custom_call.1']
    %12 = vsyncpa [#allocation3], 0
    // Predicated region
    $region2: #{tpu_custom_call.1} parent=1 // pred_check
      _
    $region3: #{tpu_custom_call.1} parent=1 // pred_check_branch
      %14 = sbr.rel (0) target = $region5
    $region4: #{tpu_custom_call.1} parent=1 // pred_region
      _
    $region5: #{tpu_custom_call.1} parent=1 // pred_fallthru
      _
    // Predicated region
    $region6: #{tpu_custom_call.1} parent=1 // pred_check
      _
    $region7: #{tpu_custom_call.1} parent=1 // pred_check_branch
      %16 = sbr.rel (0) target = $region9
    $region8: #{tpu_custom_call.1} parent=1 // pred_region
      _
    $region9: #{tpu_custom_call.1} parent=1 // pred_fallthru
      _
    // Predicated region
    $region10: #{tpu_custom_call.1} parent=1 // pred_check
      _
    $region11: #{tpu_custom_call.1} parent=1 // pred_check_branch
      %18 = sbr.rel (0) target = $region13
    $region12: #{tpu_custom_call.1} parent=1 // pred_region
      _
    $region13: #{tpu_custom_call.1} parent=1 // pred_fallthru
      _
    // Predicated region
    $region14: #{tpu_custom_call.1} parent=1 // pred_check
      _
    $region15: #{tpu_custom_call.1} parent=1 // pred_check_branch
      %20 = sbr.rel (0) target = $region17
    $region16: #{tpu_custom_call.1} parent=1 // pred_region
      _
    $region17: #{tpu_custom_call.1} parent=1 // pred_fallthru
      _
    // Predicated region
    $region18: #{tpu_custom_call.1} parent=1 // pred_check
      _
    $region19: #{tpu_custom_call.1} parent=1 // pred_check_branch
      %22 = sbr.rel (0) target = $region21
    $region20: #{tpu_custom_call.1} parent=1 // pred_region
      _
    $region21: #{tpu_custom_call.1} parent=1 // pred_fallthru
      _
    // Predicated region
    $region22: #{tpu_custom_call.1} parent=1 // pred_check
      _
    $region23: #{tpu_custom_call.1} parent=1 // pred_check_branch
      %24 = sbr.rel (0) target = $region25
    $region24: #{tpu_custom_call.1} parent=1 // pred_region
      _
    $region25: #{tpu_custom_call.1} parent=1 // pred_fallthru
      _
    // Predicated region
    $region26: #{tpu_custom_call.1} parent=1 // pred_check
      _
    $region27: #{tpu_custom_call.1} parent=1 // pred_check_branch
      %26 = sbr.rel (0) target = $region29
    $region28: #{tpu_custom_call.1} parent=1 // pred_region
      _
    $region29: #{tpu_custom_call.1} parent=1 // pred_fallthru
      _
    %v28 = vld [vmem:[%s1] sm:$0xf]
    %v29 = vld [vmem:[%s2] sm:$0x1]
    %v30 = vld [vmem:[%s3] sm:$0xf]
    %v31 = vld [vmem:[%s3 + $0x4] sm:$0xf]
    %v32 = vld [vmem:[%s3 + $0x8] sm:$0xf]
    %v33 = vld [vmem:[%s3 + $0xc] sm:$0xf]
    %v34 = vld [vmem:[%s3 + $0x10] sm:$0xf]
    %v35 = vld [vmem:[%s3 + $0x14] sm:$0xf]
    %v36 = vld [vmem:[%s3 + $0x18] sm:$0xf]
    %v37 = vld [vmem:[%s3 + $0x1c] sm:$0xf]
    %v38 = vld [vmem:[%s3 + $0x20] sm:$0xf]
    %v39 = vld [vmem:[%s3 + $0x24] sm:$0xf]
    %v40 = vld [vmem:[%s3 + $0x28] sm:$0xf]
    %v41 = vld [vmem:[%s3 + $0x2c] sm:$0xf]
    %v42 = vld [vmem:[%s3 + $0x30] sm:$0xf]
    %v43 = vld [vmem:[%s3 + $0x34] sm:$0xf]
    %v44 = vld [vmem:[%s3 + $0x38] sm:$0xf]
    %v45 = vld [vmem:[%s3 + $0x3c] sm:$0xf]
    %v46 = vld [vmem:[%s4] sm:$0x1]
    %v47 = vld [vmem:[%s5] sm:$0xf]
    %v48 = vld [vmem:[%s5 + $0x4] sm:$0xf]
    %v49 = vld [vmem:[%s5 + $0x8] sm:$0xf]
    %v50 = vld [vmem:[%s5 + $0xc] sm:$0xf]
    %v51 = vld [vmem:[%s5 + $0x10] sm:$0xf]
    %v52 = vld [vmem:[%s5 + $0x14] sm:$0xf]
    %v53 = vld [vmem:[%s5 + $0x18] sm:$0xf]
    %v54 = vld [vmem:[%s5 + $0x1c] sm:$0xf]
    %v55 = vld [vmem:[%s5 + $0x20] sm:$0xf]
    %v56 = vld [vmem:[%s5 + $0x24] sm:$0xf]
    %v57 = vld [vmem:[%s5 + $0x28] sm:$0xf]
    %v58 = vld [vmem:[%s5 + $0x2c] sm:$0xf]
    %v59 = vld [vmem:[%s5 + $0x30] sm:$0xf]
    %v60 = vld [vmem:[%s5 + $0x34] sm:$0xf]
    %v61 = vld [vmem:[%s5 + $0x38] sm:$0xf]
    %v62 = vld [vmem:[%s5 + $0x3c] sm:$0xf]
    %v63 = vld [vmem:[%s6] sm:$0x1]
    %v64 = vld [vmem:[%s0] sm:$0xff]
    %v65 = vpack.c.bf16 %v64, %v64
    %v67 = vlaneseq
    %v68 = vshrl.u32 %v67, 7
    %v69 = vsub.s32 0, %v68
    %v70 = vrot.slane %v29, %v69
    %vm72 = vcmask 64512
    %v74 = vsel %vm72, %v65, 0
    %vm76 = vcmask 1043456
    %v78 = vsel %vm76, %v28, 0
    %80 = vmatprep.subr.bf16.mxu0 0
    %81 = vmatpush1.bf16.msra.mxu0 %v78
    %82 = vmatprep.subr.bf16.mxu0 0
    %83 = vmatpush1.bf16.msra.mxu0 0
    %84 = vmatprep.subr.bf16.mxu0 0
    %85 = vmatpush1.bf16.msra.mxu0 0
    %86 = vmatprep.subr.bf16.mxu0 0
    %87 = vmatpush1.bf16.msra.mxu0 0
    %88 = vmatprep.subr.bf16.mxu0 0
    %89 = vmatpush1.bf16.msra.mxu0 0
    %90 = vmatprep.subr.bf16.mxu0 0
    %91 = vmatpush1.bf16.msra.mxu0 0
    %92 = vmatprep.subr.bf16.mxu0 0
    %93 = vmatpush1.bf16.msra.mxu0 0
    %94 = vmatprep.subr.bf16.mxu0 0
    %95 = vmatpush1.bf16.msra.mxu0 0
    %96 = vmatprep.subr.bf16.mxu0 0
    %97 = vmatpush1.bf16.msra.mxu0 0
    %98 = vmatprep.subr.bf16.mxu0 0
    %99 = vmatpush1.bf16.msra.mxu0 0
    %100 = vmatprep.subr.bf16.mxu0 0
    %101 = vmatpush1.bf16.msra.mxu0 0
    %102 = vmatprep.subr.bf16.mxu0 0
    %103 = vmatpush1.bf16.msra.mxu0 0
    %104 = vmatprep.subr.bf16.mxu0 0
    %105 = vmatpush1.bf16.msra.mxu0 0
    %106 = vmatprep.subr.bf16.mxu0 0
    %107 = vmatpush1.bf16.msra.mxu0 0
    %108 = vmatprep.subr.bf16.mxu0 0
    %109 = vmatpush1.bf16.msra.mxu0 0
    %110 = vmatprep.subr.bf16.mxu0 0
    %111 = vmatpush1.bf16.msra.mxu0 0
    %112 = vmatprep.mubr.bf16.mxu0 0
    %113 = vmatmul.mubr.bf16.gmra.mrb[0].mxu0 %v74
    %v114 = vpop.f32.mrb[0].mxu0
    %v115 = vadd.f32 %v70, %v114
    %v116 = vpop.f32.mrb[0].mxu0
    %v117 = vpop.f32.mrb[0].mxu0
    %v118 = vpop.f32.mrb[0].mxu0
    %119 = vdwg.mxu0
    %v120 = vmax.f32 %v115, 0.0
    %v121 = vpack.c.bf16 %v120, %v120
    %v123 = vlaneseq
    %v124 = vshrl.u32 %v123, 7
    %v125 = vsub.s32 0, %v124
    %v126 = vrot.slane %v46, %v125
    %v144 = vunpack.c.l.b16 %v30
    %v145 = vunpack.c.l.b16 %v31
    %v146 = vunpack.c.l.b16 %v32
    %v147 = vunpack.c.l.b16 %v33
    %v148 = vunpack.c.l.b16 %v34
    %v149 = vunpack.c.l.b16 %v35
    %v150 = vunpack.c.l.b16 %v36
    %v151 = vunpack.c.l.b16 %v37
    %v152 = vunpack.c.l.b16 %v38
    %v153 = vunpack.c.l.b16 %v39
    %v154 = vunpack.c.l.b16 %v40
    %v155 = vunpack.c.l.b16 %v41
    %v156 = vunpack.c.l.b16 %v42
    %v157 = vunpack.c.l.b16 %v43
    %v158 = vunpack.c.l.b16 %v44
    %v159 = vunpack.c.l.b16 %v45
    %v160 = vpack.c.b16 %v145, %v144
    %v161 = vpack.c.b16 %v147, %v146
    %v162 = vpack.c.b16 %v149, %v148
    %v163 = vpack.c.b16 %v151, %v150
    %v164 = vpack.c.b16 %v153, %v152
    %v165 = vpack.c.b16 %v155, %v154
    %v166 = vpack.c.b16 %v157, %v156
    %v167 = vpack.c.b16 %v159, %v158
    %176 = vmatprep.subr.bf16.mxu0 0
    %177 = vmatpush1.bf16.msra.mxu0 %v160
    %178 = vmatprep.subr.bf16.mxu0 0
    %179 = vmatpush1.bf16.msra.mxu0 %v161
    %180 = vmatprep.subr.bf16.mxu0 0
    %181 = vmatpush1.bf16.msra.mxu0 %v162
    %182 = vmatprep.subr.bf16.mxu0 0
    %183 = vmatpush1.bf16.msra.mxu0 %v163
    %184 = vmatprep.subr.bf16.mxu0 0
    %185 = vmatpush1.bf16.msra.mxu0 %v164
    %186 = vmatprep.subr.bf16.mxu0 0
    %187 = vmatpush1.bf16.msra.mxu0 %v165
    %188 = vmatprep.subr.bf16.mxu0 0
    %189 = vmatpush1.bf16.msra.mxu0 %v166
    %190 = vmatprep.subr.bf16.mxu0 0
    %191 = vmatpush1.bf16.msra.mxu0 %v167
    %192 = vmatprep.subr.bf16.mxu0 0
    %193 = vmatpush1.bf16.msra.mxu0 0
    %194 = vmatprep.subr.bf16.mxu0 0
    %195 = vmatpush1.bf16.msra.mxu0 0
    %196 = vmatprep.subr.bf16.mxu0 0
    %197 = vmatpush1.bf16.msra.mxu0 0
    %198 = vmatprep.subr.bf16.mxu0 0
    %199 = vmatpush1.bf16.msra.mxu0 0
    %200 = vmatprep.subr.bf16.mxu0 0
    %201 = vmatpush1.bf16.msra.mxu0 0
    %202 = vmatprep.subr.bf16.mxu0 0
    %203 = vmatpush1.bf16.msra.mxu0 0
    %204 = vmatprep.subr.bf16.mxu0 0
    %205 = vmatpush1.bf16.msra.mxu0 0
    %206 = vmatprep.subr.bf16.mxu0 0
    %207 = vmatpush1.bf16.msra.mxu0 0
    %208 = vmatprep.mubr.bf16.mxu0 0
    %209 = vmatmul.mubr.bf16.gmra.mrb[0].mxu0 %v121
    %v210 = vpop.f32.mrb[0].mxu0
    %v211 = vadd.f32 %v126, %v210
    %v212 = vpop.f32.mrb[0].mxu0
    %v213 = vpop.f32.mrb[0].mxu0
    %v214 = vpop.f32.mrb[0].mxu0
    %215 = vdwg.mxu0
    %v216 = vmax.f32 %v211, 0.0
    %v217 = vpack.c.bf16 %v216, %v216
    %v219 = vlaneseq
    %v220 = vshrl.u32 %v219, 7
    %v221 = vsub.s32 0, %v220
    %v222 = vrot.slane %v63, %v221
    %v240 = vunpack.c.l.b16 %v47
    %v241 = vunpack.c.l.b16 %v48
    %v242 = vunpack.c.l.b16 %v49
    %v243 = vunpack.c.l.b16 %v50
    %v244 = vunpack.c.l.b16 %v51
    %v245 = vunpack.c.l.b16 %v52
    %v246 = vunpack.c.l.b16 %v53
    %v247 = vunpack.c.l.b16 %v54
    %v248 = vunpack.c.l.b16 %v55
    %v249 = vunpack.c.l.b16 %v56
    %v250 = vunpack.c.l.b16 %v57
    %v251 = vunpack.c.l.b16 %v58
    %v252 = vunpack.c.l.b16 %v59
    %v253 = vunpack.c.l.b16 %v60
    %v254 = vunpack.c.l.b16 %v61
    %v255 = vunpack.c.l.b16 %v62
    %v256 = vpack.c.b16 %v241, %v240
    %v257 = vpack.c.b16 %v243, %v242
    %v258 = vpack.c.b16 %v245, %v244
    %v259 = vpack.c.b16 %v247, %v246
    %v260 = vpack.c.b16 %v249, %v248
    %v261 = vpack.c.b16 %v251, %v250
    %v262 = vpack.c.b16 %v253, %v252
    %v263 = vpack.c.b16 %v255, %v254
    %272 = vmatprep.subr.bf16.mxu0 0
    %273 = vmatpush1.bf16.msra.mxu0 %v256
    %274 = vmatprep.subr.bf16.mxu0 0
    %275 = vmatpush1.bf16.msra.mxu0 %v257
    %276 = vmatprep.subr.bf16.mxu0 0
    %277 = vmatpush1.bf16.msra.mxu0 %v258
    %278 = vmatprep.subr.bf16.mxu0 0
    %279 = vmatpush1.bf16.msra.mxu0 %v259
    %280 = vmatprep.subr.bf16.mxu0 0
    %281 = vmatpush1.bf16.msra.mxu0 %v260
    %282 = vmatprep.subr.bf16.mxu0 0
    %283 = vmatpush1.bf16.msra.mxu0 %v261
    %284 = vmatprep.subr.bf16.mxu0 0
    %285 = vmatpush1.bf16.msra.mxu0 %v262
    %286 = vmatprep.subr.bf16.mxu0 0
    %287 = vmatpush1.bf16.msra.mxu0 %v263
    %288 = vmatprep.subr.bf16.mxu0 0
    %289 = vmatpush1.bf16.msra.mxu0 0
    %290 = vmatprep.subr.bf16.mxu0 0
    %291 = vmatpush1.bf16.msra.mxu0 0
    %292 = vmatprep.subr.bf16.mxu0 0
    %293 = vmatpush1.bf16.msra.mxu0 0
    %294 = vmatprep.subr.bf16.mxu0 0
    %295 = vmatpush1.bf16.msra.mxu0 0
    %296 = vmatprep.subr.bf16.mxu0 0
    %297 = vmatpush1.bf16.msra.mxu0 0
    %298 = vmatprep.subr.bf16.mxu0 0
    %299 = vmatpush1.bf16.msra.mxu0 0
    %300 = vmatprep.subr.bf16.mxu0 0
    %301 = vmatpush1.bf16.msra.mxu0 0
    %302 = vmatprep.subr.bf16.mxu0 0
    %303 = vmatpush1.bf16.msra.mxu0 0
    %304 = vmatprep.mubr.bf16.mxu0 0
    %305 = vmatmul.mubr.bf16.gmra.mrb[0].mxu0 %v217
    %v306 = vpop.f32.mrb[0].mxu0
    %v307 = vadd.f32 %v222, %v306
    %v308 = vpop.f32.mrb[0].mxu0
    %v309 = vpop.f32.mrb[0].mxu0
    %v310 = vpop.f32.mrb[0].mxu0
    %311 = vdwg.mxu0
    %vm312 = vcmask 31744
    %313 = vst.msk [vmem:[#allocation2] sm:$0xff] %vm312, %v307
    // Predicated region
    $region30: #{tpu_custom_call.1} parent=1 // pred_check
      _
    $region31: #{tpu_custom_call.1} parent=1 // pred_check_branch
      %315 = sbr.rel (0) target = $region33
    $region32: #{tpu_custom_call.1} parent=1 // pred_region
      %s317 = ssub.s32 128, 32
      %318 = vsyncadd [#allocation3], %s317
      %s319 = sshll.u32 [#allocation2], 4
      %s320 = int_to_ptr.vmem [resolvable:$true] %s319
      %325 = dma.vmem_to_hbm [thread:$0]  %s320, 32, %s7, [#allocation3], 32, 32, 2
    $region33: #{tpu_custom_call.1} parent=1 // pred_fallthru
      _
    // Predicated region
    $region34: #{tpu_custom_call.1} parent=1 // pred_check
      _
    $region35: #{tpu_custom_call.1} parent=1 // pred_check_branch
      %327 = sbr.rel (0) target = $region37
    $region36: #{tpu_custom_call.1} parent=1 // pred_region
      %328 = dma.done [#allocation3], 128
    $region37: #{tpu_custom_call.1} parent=1 // pred_fallthru
      _
    %329 = vsyncpa [#allocation3], 1

</llo_original>
